<compile_context>
chip_gen: v7x
topology: tpu7x:2x2x1
jax: 0.10.0
libtpu: 0.0.40
codegen_flags: <defaults>
</compile_context>

<pallas_src>
import math
import functools

import jax
import jax.numpy as jnp
from jax.experimental import pallas as pl
from jax.experimental.pallas import tpu as pltpu

_LN_EPS = 1e-5
_LANE = 128  # TPU lane width: pad the model dim to this for lane-dense layout


def _mha_kernel(q_ref, k_ref, v_ref,
                wq_ref, bq_ref, wk_ref, bk_ref, wv_ref, bv_ref,
                wf_ref, bf_ref, gamma_ref, beta_ref,
                out_ref, *, d_model):
    f32, bf16 = jnp.float32, jnp.bfloat16
    bb, lq, dp = q_ref.shape
    lk = k_ref.shape[1]

    # Fused Q/K/V projections on flattened rows: one bf16 MXU matmul per stream.
    # (1/sqrt(key_len) score scale is pre-folded into wq/bq in the wrapper.)
    q2d = q_ref[...].reshape(bb * lq, dp).astype(bf16)
    k2d = k_ref[...].reshape(bb * lk, dp).astype(bf16)
    v2d = v_ref[...].reshape(bb * lk, dp).astype(bf16)

    q3 = (jnp.dot(q2d, wq_ref[...], preferred_element_type=f32)
          + bq_ref[...]).reshape(bb, lq, dp).astype(bf16)
    k3 = (jnp.dot(k2d, wk_ref[...], preferred_element_type=f32)
          + bk_ref[...]).reshape(bb, lk, dp).astype(bf16)
    v3 = (jnp.dot(v2d, wv_ref[...], preferred_element_type=f32)
          + bv_ref[...]).reshape(bb, lk, dp).astype(bf16)

    # Scores + softmax over keys (f32).  Padded lanes of q3/k3 are exact zeros, so the
    # contraction over the padded width is exact.
    # TODO(synk): for real-sized Lq/Lk, tile the key axis with an online-softmax (flash)
    # accumulator instead of materializing the [bb, Lq, Lk] f32 scores.
    scores = jnp.einsum('bqd,bkd->bqk', q3, k3, preferred_element_type=f32)
    m = jnp.max(scores, axis=-1, keepdims=True)
    e = jnp.exp(scores - m)
    alphas = e * pl.reciprocal(jnp.sum(e, axis=-1, keepdims=True), approx=True)

    # Context + final projection.
    ctx = jnp.einsum('bqk,bkd->bqd', alphas.astype(bf16), v3,
                     preferred_element_type=f32)
    ctx2d = (jnp.dot(ctx.reshape(bb * lq, dp).astype(bf16), wf_ref[...],
                     preferred_element_type=f32) + bf_ref[...])

    # Residual (re-read q_ref here -> short f32 live range) + LayerNorm over the REAL
    # model width d_model (padded lanes of y are zero, so the sums only see real lanes).
    y = q_ref[...].astype(f32) + ctx2d.reshape(bb, lq, dp)
    inv_d = 1.0 / d_model
    mean = jnp.sum(y, axis=-1, keepdims=True) * inv_d
    var = jnp.sum(y * y, axis=-1, keepdims=True) * inv_d - mean * mean   # biased variance
    normed = (y - mean) * jax.lax.rsqrt(var + _LN_EPS)
    out_ref[...] = (normed * gamma_ref[...].reshape(1, 1, dp)
                    + beta_ref[...].reshape(1, 1, dp)).astype(out_ref.dtype)


def prepare_fused_params(params, key_len, d_pad=_LANE):
    """Run ONCE per parameter set / key_len (hoisted out of the per-call path).

    * Algebraically fuses the outer linear_{q,k,v} with the inner Attention linears:
        (x @ Wo + bo) @ Wi + bi == x @ (Wo @ Wi) + (bo @ Wi + bi)
    * Folds the 1/sqrt(key_len) score scale into the fused Q weights/bias
      (the reference scales by sqrt(key_len), NOT sqrt(key_dim) — reproduced).
    * Zero-pads everything from D to the lane width d_pad and casts matmul weights to bf16.
    """
    f32, bf16 = jnp.float32, jnp.bfloat16
    p = params
    D = p["wq"].shape[0]
    assert d_pad >= D
    scale = 1.0 / math.sqrt(key_len)

    def pad2(w):
        pa = d_pad if w.shape[0] != 1 else 1
        return jnp.pad(w, ((0, pa - w.shape[0]), (0, d_pad - w.shape[1])))

    wq = pad2(jnp.dot(p["wq"], p["wq2"]) * scale).astype(bf16)
    wk = pad2(jnp.dot(p["wk"], p["wk2"])).astype(bf16)
    wv = pad2(jnp.dot(p["wv"], p["wv2"])).astype(bf16)
    bq = pad2((jnp.dot(p["bq"], p["wq2"]) + p["bq2"]) * scale).astype(f32)
    bk = pad2(jnp.dot(p["bk"], p["wk2"]) + p["bk2"]).astype(f32)
    bv = pad2(jnp.dot(p["bv"], p["wv2"]) + p["bv2"]).astype(f32)
    wf = pad2(p["wf"]).astype(bf16)
    bf = pad2(p["bf"]).astype(f32)
    gamma = pad2(p["gamma"]).astype(f32)
    beta = pad2(p["beta"]).astype(f32)
    return (wq, bq, wk, bk, wv, bv, wf, bf, gamma, beta)


@functools.partial(jax.jit, static_argnames=("num_heads",))
def multi_head_attention(queries, keys, values, fused_params, num_heads=1):
    """queries/keys/values: [B, L, D] float32; fused_params from prepare_fused_params."""
    B, Lq, D = queries.shape
    Lk = keys.shape[1]
    assert D % num_heads == 0
    assert num_heads == 1  # TODO(synk): reference module errors for num_heads > 1 (see header)

    wq = fused_params[0]
    Dp = wq.shape[0]
    pad = ((0, 0), (0, 0), (0, Dp - D))
    qp = jnp.pad(queries.astype(jnp.float32), pad)   # lane-dense activations (zeros in pad)
    kp = jnp.pad(keys.astype(jnp.float32), pad)
    vp = jnp.pad(values.astype(jnp.float32), pad)

    # Batch blocking: >=2 "parallel" grid steps whenever B is even (v7x dual TensorCore +
    # DMA/compute pipeline overlap); keep splitting only while each step still feeds >=256
    # rows per projection matmul (v6e/v7x 2x256^2 MXU; 128-row granules suffice on v5e).
    steps = 1
    while B % (steps * 2) == 0 and (steps * 2 == 2 or
                                    (B // (steps * 2)) * min(Lq, Lk) >= 256):
        steps *= 2
    bb = B // steps

    # Explicit VMEM budget (double-buffered activation blocks + weights + f32 intermediates),
    # clamped below v7x's 64 MiB physical VMEM; also valid on 128 MiB v5e/v6e.
    def _nbytes(a):
        return int(a.size) * a.dtype.itemsize
    act_blk_bytes = 4 * bb * (2 * Lq + 2 * Lk) * Dp
    weight_bytes = sum(_nbytes(a) for a in fused_params)
    inter_bytes = 4 * bb * (3 * Lq * Lk + 2 * (Lq + 2 * Lk) * Dp)
    vmem_limit = int(min(max(2 * (act_blk_bytes + weight_bytes) + inter_bytes + (4 << 20),
                             32 << 20), 60 << 20))

    in_specs = [
        pl.BlockSpec((bb, Lq, Dp), lambda b: (b, 0, 0)),
        pl.BlockSpec((bb, Lk, Dp), lambda b: (b, 0, 0)),
        pl.BlockSpec((bb, Lk, Dp), lambda b: (b, 0, 0)),
    ]
    # Grid-invariant weights: full-array blocks, constant index_map (no per-step DMA).
    # TODO(synk): at large D, single-buffer these (pipeline_mode=pl.Buffered(1)) to halve
    # weight VMEM; kept default-buffered here for maximum lowering portability.
    in_specs += [pl.BlockSpec(w.shape, lambda b: (0, 0)) for w in fused_params]

    kernel = functools.partial(_mha_kernel, d_model=D)
    out_p = pl.pallas_call(
        kernel,
        out_shape=jax.ShapeDtypeStruct((B, Lq, Dp), queries.dtype),
        grid_spec=pltpu.PrefetchScalarGridSpec(
            num_scalar_prefetch=0,
            grid=(steps,),
            in_specs=in_specs,
            out_specs=pl.BlockSpec((bb, Lq, Dp), lambda b: (b, 0, 0)),
        ),
        compiler_params=pltpu.CompilerParams(
            dimension_semantics=("parallel",),
            vmem_limit_bytes=vmem_limit),
    )(qp, kp, vp, *fused_params)

    return out_p[..., :D].astype(queries.dtype)


def mha_reference(q_in, k_in, v_in, p):
    """Pure-JAX f32 reference mirroring the PyTorch forward (num_heads=1, unfused)."""
    q1 = q_in @ p["wq"] + p["bq"]
    k1 = k_in @ p["wk"] + p["bk"]
    v1 = v_in @ p["wv"] + p["bv"]
    q2 = q1 @ p["wq2"] + p["bq2"]
    k2 = k1 @ p["wk2"] + p["bk2"]
    v2 = v1 @ p["wv2"] + p["bv2"]
    Lk = k_in.shape[1]
    scores = jnp.einsum("bqd,bkd->bqk", q2, k2) / math.sqrt(Lk)
    alphas = jax.nn.softmax(scores, axis=-1)
    alphas = jnp.where(jnp.isnan(alphas), 0.0, alphas)
    ctx = jnp.einsum("bqk,bkd->bqd", alphas, v2)
    ctx = ctx @ p["wf"] + p["bf"]
    y = q_in + ctx
    mean = jnp.mean(y, axis=-1, keepdims=True)
    var = jnp.mean((y - mean) ** 2, axis=-1, keepdims=True)
    return (y - mean) / jnp.sqrt(var + _LN_EPS) * p["gamma"] + p["beta"]


def init_params(key, D):
    names = ["wq", "wk", "wv", "wq2", "wk2", "wv2", "wf"]
    ks = jax.random.split(key, 2 * len(names) + 2)
    p = {}
    for i, n in enumerate(names):
        p[n] = 0.1 * jax.random.normal(ks[2 * i], (D, D), jnp.float32)
        p["b" + n[1:]] = 0.1 * jax.random.normal(ks[2 * i + 1], (1, D), jnp.float32)
    p["gamma"] = 1.0 + 0.1 * jax.random.normal(ks[-2], (1, D), jnp.float32)
    p["beta"] = 0.1 * jax.random.normal(ks[-1], (1, D), jnp.float32)
    return p


if __name__ == "__main__":
    B, Lq, Lk, D = 2, 8, 8, 32
    num_heads = 1  # reference module only runs with num_heads == 1 (see header TODO)

    root = jax.random.PRNGKey(0)
    kq, kk, kv, kparam = jax.random.split(root, 4)
    queries = jax.random.normal(kq, (B, Lq, D), jnp.float32)
    keys = jax.random.normal(kk, (B, Lk, D), jnp.float32)
    values = jax.random.normal(kv, (B, Lk, D), jnp.float32)
    params = init_params(kparam, D)

    # Weight fusion / padding / bf16 casting done once, outside the per-call path.
    fused = prepare_fused_params(params, key_len=Lk)

    out = multi_head_attention(queries, keys, values, fused, num_heads=num_heads)
    out = jax.block_until_ready(out)

    ref = mha_reference(queries, keys, values, params)
    assert out.shape == (B, Lq, D)
    err = float(jnp.max(jnp.abs(out - ref)))
    assert jnp.allclose(out, ref, rtol=1e-2, atol=1e-2), "max abs diff %f" % err

    print("KERNEL_OK")
</pallas_src>

<mosaic_0001>
module attributes {stable_mosaic.version = 11 : i64} {
  func.func @_mha_kernel(%arg0: i32, %arg1: memref<1x8x128xf32, #tpu.memory_space<vmem>>, %arg2: memref<1x8x128xf32, #tpu.memory_space<vmem>>, %arg3: memref<1x8x128xf32, #tpu.memory_space<vmem>>, %arg4: memref<128x128xbf16, #tpu.memory_space<vmem>>, %arg5: memref<1x128xf32, #tpu.memory_space<vmem>>, %arg6: memref<128x128xbf16, #tpu.memory_space<vmem>>, %arg7: memref<1x128xf32, #tpu.memory_space<vmem>>, %arg8: memref<128x128xbf16, #tpu.memory_space<vmem>>, %arg9: memref<1x128xf32, #tpu.memory_space<vmem>>, %arg10: memref<128x128xbf16, #tpu.memory_space<vmem>>, %arg11: memref<1x128xf32, #tpu.memory_space<vmem>>, %arg12: memref<1x128xf32, #tpu.memory_space<vmem>>, %arg13: memref<1x128xf32, #tpu.memory_space<vmem>>, %arg14: memref<1x8x128xf32, #tpu.memory_space<vmem>>) attributes {dimension_semantics = [#tpu.dimension_semantics<parallel>], iteration_bounds = array<i64: 2>, scalar_prefetch = 0 : i64, scratch_operands = 0 : i64, tpu.core_type = #tpu.core_type<tc>, window_params = [{transform_indices = @transform_0, window_bounds = array<i64: 1, 8, 128>}, {transform_indices = @transform_1, window_bounds = array<i64: 1, 8, 128>}, {transform_indices = @transform_2, window_bounds = array<i64: 1, 8, 128>}, {pipeline_mode = #tpu.pipeline_mode<synchronous>, transform_indices = @transform_3, window_bounds = array<i64: 128, 128>}, {pipeline_mode = #tpu.pipeline_mode<synchronous>, transform_indices = @transform_4, window_bounds = array<i64: 1, 128>}, {pipeline_mode = #tpu.pipeline_mode<synchronous>, transform_indices = @transform_5, window_bounds = array<i64: 128, 128>}, {pipeline_mode = #tpu.pipeline_mode<synchronous>, transform_indices = @transform_6, window_bounds = array<i64: 1, 128>}, {pipeline_mode = #tpu.pipeline_mode<synchronous>, transform_indices = @transform_7, window_bounds = array<i64: 128, 128>}, {pipeline_mode = #tpu.pipeline_mode<synchronous>, transform_indices = @transform_8, window_bounds = array<i64: 1, 128>}, {pipeline_mode = #tpu.pipeline_mode<synchronous>, transform_indices = @transform_9, window_bounds = array<i64: 128, 128>}, {pipeline_mode = #tpu.pipeline_mode<synchronous>, transform_indices = @transform_10, window_bounds = array<i64: 1, 128>}, {pipeline_mode = #tpu.pipeline_mode<synchronous>, transform_indices = @transform_11, window_bounds = array<i64: 1, 128>}, {pipeline_mode = #tpu.pipeline_mode<synchronous>, transform_indices = @transform_12, window_bounds = array<i64: 1, 128>}, {transform_indices = @transform_13, window_bounds = array<i64: 1, 8, 128>}]} {
    %c0 = arith.constant 0 : index
    %c0_0 = arith.constant 0 : index
    %c0_1 = arith.constant 0 : index
    %0 = vector.load %arg1[%c0, %c0_0, %c0_1] : memref<1x8x128xf32, #tpu.memory_space<vmem>>, vector<1x8x128xf32>
    %1 = vector.shape_cast %0 : vector<1x8x128xf32> to vector<8x128xf32>
    %2 = arith.truncf %1 : vector<8x128xf32> to vector<8x128xbf16>
    %c0_2 = arith.constant 0 : index
    %c0_3 = arith.constant 0 : index
    %c0_4 = arith.constant 0 : index
    %3 = vector.load %arg2[%c0_2, %c0_3, %c0_4] : memref<1x8x128xf32, #tpu.memory_space<vmem>>, vector<1x8x128xf32>
    %4 = vector.shape_cast %3 : vector<1x8x128xf32> to vector<8x128xf32>
    %5 = arith.truncf %4 : vector<8x128xf32> to vector<8x128xbf16>
    %c0_5 = arith.constant 0 : index
    %c0_6 = arith.constant 0 : index
    %c0_7 = arith.constant 0 : index
    %6 = vector.load %arg3[%c0_5, %c0_6, %c0_7] : memref<1x8x128xf32, #tpu.memory_space<vmem>>, vector<1x8x128xf32>
    %7 = vector.shape_cast %6 : vector<1x8x128xf32> to vector<8x128xf32>
    %8 = arith.truncf %7 : vector<8x128xf32> to vector<8x128xbf16>
    %c0_8 = arith.constant 0 : index
    %c0_9 = arith.constant 0 : index
    %9 = vector.load %arg4[%c0_8, %c0_9] : memref<128x128xbf16, #tpu.memory_space<vmem>>, vector<128x128xbf16>
    %cst = arith.constant dense<0.000000e+00> : vector<8x128xf32>
    %10 = tpu.matmul %2, %9, %cst {dimension_numbers = #tpu.dot_dimension_numbers<[1], [0], [0], [1], [0, 0, 1, 1], [], []>} : vector<8x128xbf16>, vector<128x128xbf16>, vector<8x128xf32> -> vector<8x128xf32>
    %c0_10 = arith.constant 0 : index
    %c0_11 = arith.constant 0 : index
    %11 = vector.load %arg5[%c0_10, %c0_11] : memref<1x128xf32, #tpu.memory_space<vmem>>, vector<1x128xf32>
    %12 = vector.broadcast %11 : vector<1x128xf32> to vector<8x128xf32>
    %13 = arith.addf %10, %12 : vector<8x128xf32>
    %14 = vector.shape_cast %13 : vector<8x128xf32> to vector<1x8x128xf32>
    %15 = arith.truncf %14 : vector<1x8x128xf32> to vector<1x8x128xbf16>
    %c0_12 = arith.constant 0 : index
    %c0_13 = arith.constant 0 : index
    %16 = vector.load %arg6[%c0_12, %c0_13] : memref<128x128xbf16, #tpu.memory_space<vmem>>, vector<128x128xbf16>
    %cst_14 = arith.constant dense<0.000000e+00> : vector<8x128xf32>
    %17 = tpu.matmul %5, %16, %cst_14 {dimension_numbers = #tpu.dot_dimension_numbers<[1], [0], [0], [1], [0, 0, 1, 1], [], []>} : vector<8x128xbf16>, vector<128x128xbf16>, vector<8x128xf32> -> vector<8x128xf32>
    %c0_15 = arith.constant 0 : index
    %c0_16 = arith.constant 0 : index
    %18 = vector.load %arg7[%c0_15, %c0_16] : memref<1x128xf32, #tpu.memory_space<vmem>>, vector<1x128xf32>
    %19 = vector.broadcast %18 : vector<1x128xf32> to vector<8x128xf32>
    %20 = arith.addf %17, %19 : vector<8x128xf32>
    %21 = vector.shape_cast %20 : vector<8x128xf32> to vector<1x8x128xf32>
    %22 = arith.truncf %21 : vector<1x8x128xf32> to vector<1x8x128xbf16>
    %c0_17 = arith.constant 0 : index
    %c0_18 = arith.constant 0 : index
    %23 = vector.load %arg8[%c0_17, %c0_18] : memref<128x128xbf16, #tpu.memory_space<vmem>>, vector<128x128xbf16>
    %cst_19 = arith.constant dense<0.000000e+00> : vector<8x128xf32>
    %24 = tpu.matmul %8, %23, %cst_19 {dimension_numbers = #tpu.dot_dimension_numbers<[1], [0], [0], [1], [0, 0, 1, 1], [], []>} : vector<8x128xbf16>, vector<128x128xbf16>, vector<8x128xf32> -> vector<8x128xf32>
    %c0_20 = arith.constant 0 : index
    %c0_21 = arith.constant 0 : index
    %25 = vector.load %arg9[%c0_20, %c0_21] : memref<1x128xf32, #tpu.memory_space<vmem>>, vector<1x128xf32>
    %26 = vector.broadcast %25 : vector<1x128xf32> to vector<8x128xf32>
    %27 = arith.addf %24, %26 : vector<8x128xf32>
    %28 = vector.shape_cast %27 : vector<8x128xf32> to vector<1x8x128xf32>
    %29 = arith.truncf %28 : vector<1x8x128xf32> to vector<1x8x128xbf16>
    "tpu.trace_start"() <{level = 10 : i32, message = "bqd,bkd->bqk"}> : () -> ()
    %cst_22 = arith.constant dense<0.000000e+00> : vector<1x8x8xf32>
    %30 = tpu.matmul %15, %22, %cst_22 {dimension_numbers = #tpu.dot_dimension_numbers<[2], [2], [1], [1], [0, 0, 0, 1, 1, 1], [0], [0]>} : vector<1x8x128xbf16>, vector<1x8x128xbf16>, vector<1x8x8xf32> -> vector<1x8x8xf32>
    "tpu.trace_stop"() : () -> ()
    %cst_23 = arith.constant dense<0xFF800000> : vector<1x8xf32>
    %31 = vector.multi_reduction <maximumf>, %30, %cst_23 [2] : vector<1x8x8xf32> to vector<1x8xf32>
    %32 = vector.shape_cast %31 : vector<1x8xf32> to vector<1x8x1xf32>
    %33 = vector.broadcast %32 : vector<1x8x1xf32> to vector<1x8x8xf32>
    %34 = arith.subf %30, %33 : vector<1x8x8xf32>
    %35 = math.exp %34 : vector<1x8x8xf32>
    %cst_24 = arith.constant dense<0.000000e+00> : vector<1x8xf32>
    %36 = vector.multi_reduction <add>, %35, %cst_24 [2] : vector<1x8x8xf32> to vector<1x8xf32>
    %37 = vector.shape_cast %36 : vector<1x8xf32> to vector<1x8x1xf32>
    %38 = tpu.reciprocal %37 {approx = true} : vector<1x8x1xf32> -> vector<1x8x1xf32>
    %39 = vector.broadcast %38 : vector<1x8x1xf32> to vector<1x8x8xf32>
    %40 = arith.mulf %35, %39 : vector<1x8x8xf32>
    %41 = arith.truncf %40 : vector<1x8x8xf32> to vector<1x8x8xbf16>
    "tpu.trace_start"() <{level = 10 : i32, message = "bqk,bkd->bqd"}> : () -> ()
    %cst_25 = arith.constant dense<0.000000e+00> : vector<1x8x128xf32>
    %42 = tpu.matmul %41, %29, %cst_25 {dimension_numbers = #tpu.dot_dimension_numbers<[2], [1], [1], [2], [0, 0, 0, 1, 1, 2], [0], [0]>} : vector<1x8x8xbf16>, vector<1x8x128xbf16>, vector<1x8x128xf32> -> vector<1x8x128xf32>
    "tpu.trace_stop"() : () -> ()
    %43 = vector.shape_cast %42 : vector<1x8x128xf32> to vector<8x128xf32>
    %44 = arith.truncf %43 : vector<8x128xf32> to vector<8x128xbf16>
    %c0_26 = arith.constant 0 : index
    %c0_27 = arith.constant 0 : index
    %45 = vector.load %arg10[%c0_26, %c0_27] : memref<128x128xbf16, #tpu.memory_space<vmem>>, vector<128x128xbf16>
    %cst_28 = arith.constant dense<0.000000e+00> : vector<8x128xf32>
    %46 = tpu.matmul %44, %45, %cst_28 {dimension_numbers = #tpu.dot_dimension_numbers<[1], [0], [0], [1], [0, 0, 1, 1], [], []>} : vector<8x128xbf16>, vector<128x128xbf16>, vector<8x128xf32> -> vector<8x128xf32>
    %c0_29 = arith.constant 0 : index
    %c0_30 = arith.constant 0 : index
    %47 = vector.load %arg11[%c0_29, %c0_30] : memref<1x128xf32, #tpu.memory_space<vmem>>, vector<1x128xf32>
    %48 = vector.broadcast %47 : vector<1x128xf32> to vector<8x128xf32>
    %49 = arith.addf %46, %48 : vector<8x128xf32>
    %c0_31 = arith.constant 0 : index
    %c0_32 = arith.constant 0 : index
    %c0_33 = arith.constant 0 : index
    %50 = vector.load %arg1[%c0_31, %c0_32, %c0_33] : memref<1x8x128xf32, #tpu.memory_space<vmem>>, vector<1x8x128xf32>
    %51 = vector.shape_cast %49 : vector<8x128xf32> to vector<1x8x128xf32>
    %52 = arith.addf %50, %51 : vector<1x8x128xf32>
    %cst_34 = arith.constant dense<0.000000e+00> : vector<1x8xf32>
    %53 = vector.multi_reduction <add>, %52, %cst_34 [2] : vector<1x8x128xf32> to vector<1x8xf32>
    %54 = vector.shape_cast %53 : vector<1x8xf32> to vector<1x8x1xf32>
    %cst_35 = arith.constant 3.125000e-02 : f32
    %55 = vector.broadcast %cst_35 : f32 to vector<1x8x1xf32>
    %56 = arith.mulf %54, %55 : vector<1x8x1xf32>
    %57 = arith.mulf %52, %52 : vector<1x8x128xf32>
    %cst_36 = arith.constant dense<0.000000e+00> : vector<1x8xf32>
    %58 = vector.multi_reduction <add>, %57, %cst_36 [2] : vector<1x8x128xf32> to vector<1x8xf32>
    %59 = vector.shape_cast %58 : vector<1x8xf32> to vector<1x8x1xf32>
    %cst_37 = arith.constant 3.125000e-02 : f32
    %60 = vector.broadcast %cst_37 : f32 to vector<1x8x1xf32>
    %61 = arith.mulf %59, %60 : vector<1x8x1xf32>
    %62 = arith.mulf %56, %56 : vector<1x8x1xf32>
    %63 = arith.subf %61, %62 : vector<1x8x1xf32>
    %64 = vector.broadcast %56 : vector<1x8x1xf32> to vector<1x8x128xf32>
    %65 = arith.subf %52, %64 : vector<1x8x128xf32>
    %cst_38 = arith.constant 9.99999974E-6 : f32
    %66 = vector.broadcast %cst_38 : f32 to vector<1x8x1xf32>
    %67 = arith.addf %63, %66 : vector<1x8x1xf32>
    %68 = math.rsqrt %67 : vector<1x8x1xf32>
    %69 = vector.broadcast %68 : vector<1x8x1xf32> to vector<1x8x128xf32>
    %70 = arith.mulf %65, %69 : vector<1x8x128xf32>
    %c0_39 = arith.constant 0 : index
    %c0_40 = arith.constant 0 : index
    %71 = vector.load %arg12[%c0_39, %c0_40] : memref<1x128xf32, #tpu.memory_space<vmem>>, vector<1x128xf32>
    %72 = vector.shape_cast %71 : vector<1x128xf32> to vector<1x1x128xf32>
    %73 = vector.broadcast %72 : vector<1x1x128xf32> to vector<1x8x128xf32>
    %74 = arith.mulf %70, %73 : vector<1x8x128xf32>
    %c0_41 = arith.constant 0 : index
    %c0_42 = arith.constant 0 : index
    %75 = vector.load %arg13[%c0_41, %c0_42] : memref<1x128xf32, #tpu.memory_space<vmem>>, vector<1x128xf32>
    %76 = vector.shape_cast %75 : vector<1x128xf32> to vector<1x1x128xf32>
    %77 = vector.broadcast %76 : vector<1x1x128xf32> to vector<1x8x128xf32>
    %78 = arith.addf %74, %77 : vector<1x8x128xf32>
    %c0_43 = arith.constant 0 : index
    %c0_44 = arith.constant 0 : index
    %c0_45 = arith.constant 0 : index
    %79 = vector.load %arg14[%c0_43, %c0_44, %c0_45] : memref<1x8x128xf32, #tpu.memory_space<vmem>>, vector<1x8x128xf32>
    tpu.vector_store %arg14[%c0_43, %c0_44, %c0_45], %78 {strides = array<i32>} : memref<1x8x128xf32, #tpu.memory_space<vmem>>, vector<1x8x128xf32>,
    return
  }
  func.func @transform_0(%arg0: i32) -> (i32, i32, i32) {
    %c0_i32 = arith.constant 0 : i32
    %c0_i32_0 = arith.constant 0 : i32
    %c0_i32_1 = arith.constant 0 : i32
    return %arg0, %c0_i32, %c0_i32_0 : i32, i32, i32
  }
  func.func @transform_1(%arg0: i32) -> (i32, i32, i32) {
    %c0_i32 = arith.constant 0 : i32
    %c0_i32_0 = arith.constant 0 : i32
    %c0_i32_1 = arith.constant 0 : i32
    return %arg0, %c0_i32, %c0_i32_0 : i32, i32, i32
  }
  func.func @transform_2(%arg0: i32) -> (i32, i32, i32) {
    %c0_i32 = arith.constant 0 : i32
    %c0_i32_0 = arith.constant 0 : i32
    %c0_i32_1 = arith.constant 0 : i32
    return %arg0, %c0_i32, %c0_i32_0 : i32, i32, i32
  }
  func.func @transform_3(%arg0: i32) -> (i32, i32) {
    %c0_i32 = arith.constant 0 : i32
    %c0_i32_0 = arith.constant 0 : i32
    %c0_i32_1 = arith.constant 0 : i32
    return %c0_i32, %c0_i32_0 : i32, i32
  }
  func.func @transform_4(%arg0: i32) -> (i32, i32) {
    %c0_i32 = arith.constant 0 : i32
    %c0_i32_0 = arith.constant 0 : i32
    %c0_i32_1 = arith.constant 0 : i32
    return %c0_i32, %c0_i32_0 : i32, i32
  }
  func.func @transform_5(%arg0: i32) -> (i32, i32) {
    %c0_i32 = arith.constant 0 : i32
    %c0_i32_0 = arith.constant 0 : i32
    %c0_i32_1 = arith.constant 0 : i32
    return %c0_i32, %c0_i32_0 : i32, i32
  }
  func.func @transform_6(%arg0: i32) -> (i32, i32) {
    %c0_i32 = arith.constant 0 : i32
    %c0_i32_0 = arith.constant 0 : i32
    %c0_i32_1 = arith.constant 0 : i32
    return %c0_i32, %c0_i32_0 : i32, i32
  }
  func.func @transform_7(%arg0: i32) -> (i32, i32) {
    %c0_i32 = arith.constant 0 : i32
    %c0_i32_0 = arith.constant 0 : i32
    %c0_i32_1 = arith.constant 0 : i32
    return %c0_i32, %c0_i32_0 : i32, i32
  }
  func.func @transform_8(%arg0: i32) -> (i32, i32) {
    %c0_i32 = arith.constant 0 : i32
    %c0_i32_0 = arith.constant 0 : i32
    %c0_i32_1 = arith.constant 0 : i32
    return %c0_i32, %c0_i32_0 : i32, i32
  }
  func.func @transform_9(%arg0: i32) -> (i32, i32) {
    %c0_i32 = arith.constant 0 : i32
    %c0_i32_0 = arith.constant 0 : i32
    %c0_i32_1 = arith.constant 0 : i32
    return %c0_i32, %c0_i32_0 : i32, i32
  }
  func.func @transform_10(%arg0: i32) -> (i32, i32) {
    %c0_i32 = arith.constant 0 : i32
    %c0_i32_0 = arith.constant 0 : i32
    %c0_i32_1 = arith.constant 0 : i32
    return %c0_i32, %c0_i32_0 : i32, i32
  }
  func.func @transform_11(%arg0: i32) -> (i32, i32) {
    %c0_i32 = arith.constant 0 : i32
    %c0_i32_0 = arith.constant 0 : i32
    %c0_i32_1 = arith.constant 0 : i32
    return %c0_i32, %c0_i32_0 : i32, i32
  }
  func.func @transform_12(%arg0: i32) -> (i32, i32) {
    %c0_i32 = arith.constant 0 : i32
    %c0_i32_0 = arith.constant 0 : i32
    %c0_i32_1 = arith.constant 0 : i32
    return %c0_i32, %c0_i32_0 : i32, i32
  }
  func.func @transform_13(%arg0: i32) -> (i32, i32, i32) {
    %c0_i32 = arith.constant 0 : i32
    %c0_i32_0 = arith.constant 0 : i32
    %c0_i32_1 = arith.constant 0 : i32
    return %arg0, %c0_i32, %c0_i32_0 : i32, i32, i32
  }
}

</mosaic_0001>

<llo_original>
// kernel: multi_head_attention.1
$region0: #{multi_head_attention.1}
  #allocation0 [shape = 'u32[]', space=smem, size = 0x4, offset = 0x4, fixed_abs, tag = 'smem constant byte address 0x4 - core index']
  #allocation1 [shape = 'u32[144,128]{1,0:T(1,128)}', space=vmem, size = 0x12000, scoped, tag = 'internal scratch']
  %s0 = inlined_call_operand.vmem [shape: f32[2,8,128], index: 0, kind: input, shape index: {}]
  %s1 = inlined_call_operand.vmem [shape: f32[2,8,128], index: 1, kind: input, shape index: {}]
  %s2 = inlined_call_operand.vmem [shape: f32[2,8,128], index: 2, kind: input, shape index: {}]
  %s3 = inlined_call_operand.vmem [shape: bf16[128,128], index: 3, kind: input, shape index: {}]
  %s4 = inlined_call_operand.vmem [shape: f32[1,128], index: 4, kind: input, shape index: {}]
  %s5 = inlined_call_operand.hbm [shape: bf16[128,128], index: 5, kind: input, shape index: {}]
  %s6 = inlined_call_operand.hbm [shape: f32[1,128], index: 6, kind: input, shape index: {}]
  %s7 = inlined_call_operand.hbm [shape: bf16[128,128], index: 7, kind: input, shape index: {}]
  %s8 = inlined_call_operand.hbm [shape: f32[1,128], index: 8, kind: input, shape index: {}]
  %s9 = inlined_call_operand.vmem [shape: bf16[128,128], index: 9, kind: input, shape index: {}]
  %s10 = inlined_call_operand.vmem [shape: f32[1,128], index: 10, kind: input, shape index: {}]
  %s11 = inlined_call_operand.vmem [shape: f32[1,128], index: 11, kind: input, shape index: {}]
  %s12 = inlined_call_operand.vmem [shape: f32[1,128], index: 12, kind: input, shape index: {}]
  %s13 = inlined_call_operand.hbm [shape: f32[2,8,128], index: 13, kind: output, shape index: {}]
  %s14 = sld [smem:[#allocation0]]
  $region101: #{multi_head_attention.1} parent=0
    _
  %s16 = ssub.s32 1, %s14
  %s17 = scalar_select 0, %s16, %s14
  $region1: #{multi_head_attention.1} parent=0
    #allocation2 [shape = 'u8[32768]{0}', space=vmem, size = 0x8000, scoped, tag = 'input window, operand 5, single buffered']
    #allocation3 [shape = 's32[2]{0}', space=sflag, size = 0x8, scoped, tag = 'scoped memory for multi_head_attention.1']
    #allocation4 [shape = 's32[2]{0}', space=sflag, size = 0x8, scoped, tag = 'scoped memory for multi_head_attention.1']
    #allocation5 [shape = 'u8[512]{0}', space=vmem, size = 0x400, scoped, tag = 'input window, operand 6, single buffered']
    #allocation6 [shape = 's32[1]{0}', space=sflag, size = 0x4, scoped, tag = 'scoped memory for multi_head_attention.1']
    #allocation7 [shape = 'u8[32768]{0}', space=vmem, size = 0x8000, scoped, tag = 'input window, operand 7, single buffered']
    #allocation8 [shape = 'u8[512]{0}', space=vmem, size = 0x400, scoped, tag = 'input window, operand 8, single buffered']
    #allocation9 [shape = 's32[1]{0}', space=sflag, size = 0x4, scoped, tag = 'scoped memory for multi_head_attention.1']
    #allocation10 [shape = 'u8[8192]{0}', space=vmem, size = 0x2000, scoped, tag = 'output window, operand 0']
    %18 = vsyncpa [#allocation3], 0
    %19 = vsyncpa [#allocation6], 0
    %20 = vsyncpa [#allocation9], 0
    %21 = vsyncpa [#allocation4], 0
    %s22 = scalar_lea.sflag [#allocation4], 1
    %23 = vsyncpa %s22, 0
    loop: start=0, step=1, limit=4
    $region2: #{multi_head_attention.1} parent=1 // loop_pre_header
      _
    $region3: #{multi_head_attention.1} parent=1 // loop_header
      %s25 = sphi 0, %s29
      %p26 = scmp.ge.s32.totalorder %s25, 4
      %s35 = sphi 0, %s37
      %s38 = sphi 0, %s35
      %s39 = sphi 0, %s38
      %s55 = sphi 0, %s39
      %s61 = sphi 0, %s63
      %s64 = sphi 0, %s61
      %s65 = sphi 0, %s64
      %s81 = sphi 0, %s65
      %s87 = sphi 0, %s89
      %s90 = sphi 0, %s87
      %s91 = sphi 0, %s90
      %s107 = sphi 0, %s91
      %s111 = sphi 0, %s111
      %s113 = sphi 0, %s111
      %s114 = sphi 0, %s113
      %s128 = sphi 0, %s114
      %s132 = sphi 0, %s132
      %s134 = sphi 0, %s132
      %s135 = sphi 0, %s134
      %s149 = sphi 0, %s135
      %s153 = sphi 0, %s153
      %s155 = sphi 0, %s153
      %s156 = sphi 0, %s155
      %s170 = sphi 0, %s156
      %s174 = sphi 0, %s174
      %s176 = sphi 0, %s174
      %s177 = sphi 0, %s176
      %s191 = sphi 0, %s177
      %s195 = sphi 0, %s195
      %s197 = sphi 0, %s195
      %s198 = sphi 0, %s197
      %s212 = sphi 0, %s198
      %s216 = sphi 0, %s216
      %s218 = sphi 0, %s216
      %s219 = sphi 0, %s218
      %s233 = sphi 0, %s219
      %s237 = sphi 0, %s237
      %s239 = sphi 0, %s237
      %s240 = sphi 0, %s239
      %s254 = sphi 0, %s240
      %s258 = sphi 0, %s258
      %s260 = sphi 0, %s258
      %s261 = sphi 0, %s260
      %s275 = sphi 0, %s261
      %s279 = sphi 0, %s279
      %s281 = sphi 0, %s279
      %s282 = sphi 0, %s281
      %s296 = sphi 0, %s282
      %s300 = sphi 0, %s300
      %s302 = sphi 0, %s300
      %s303 = sphi 0, %s302
      %s317 = sphi 0, %s303
      %s323 = sphi 0, %s325
      %s326 = sphi 0, %s323
      %s327 = sphi 0, %s326
      %s343 = sphi 0, %s327
    $region4: #{multi_head_attention.1} parent=1 // loop_header_branch
      %28 = sbr.rel (%p26) target = $region8
    $region5: #{multi_head_attention.1} parent=1 // loop_body
      %s30 = ssub.s32 %s25, 1
      %s31 = ssub.s32 %s25, 2
      %s32 = sadd.s32 %s25, 1
      %s33 = ssub.s32 %s25, %s32
      %p34 = scmp.eq.s32.totalorder %s33, 0
      %s36 = sadd.s32 %s35, 1
      %s37 = scalar_select %p34, %s35, %s36
      %p40 = pneg %p34
      %p41 = scmp.eq.s32.totalorder %s25, 1
      %p42 = por %p40, %p41
      %p43 = scmp.ne.s32.totalorder %s35, %s38
      %p44 = scmp.eq.s32.totalorder %s25, 0
      %p45 = por %p43, %p44
      %p46 = scmp.ne.s32.totalorder %s35, %s38
      %p47 = scmp.eq.s32.totalorder %s30, 1
      %p48 = por %p46, %p47
      %p49 = scmp.ne.s32.totalorder %s38, %s39
      %p50 = scmp.eq.s32.totalorder %s30, 0
      %p51 = por %p49, %p50
      %p52 = scmp.ne.s32.totalorder %s38, %s39
      %p53 = scmp.eq.s32.totalorder %s31, 1
      %p54 = por %p52, %p53
      %p56 = scmp.ne.s32.totalorder %s39, %s55
      %p57 = scmp.eq.s32.totalorder %s31, 0
      %p58 = por %p56, %p57
      %s59 = ssub.s32 %s25, %s32
      %p60 = scmp.eq.s32.totalorder %s59, 0
      %s62 = sadd.s32 %s61, 1
      %s63 = scalar_select %p60, %s61, %s62
      %p66 = pneg %p60
      %p67 = scmp.eq.s32.totalorder %s25, 1
      %p68 = por %p66, %p67
      %p69 = scmp.ne.s32.totalorder %s61, %s64
      %p70 = scmp.eq.s32.totalorder %s25, 0
      %p71 = por %p69, %p70
      %p72 = scmp.ne.s32.totalorder %s61, %s64
      %p73 = scmp.eq.s32.totalorder %s30, 1
      %p74 = por %p72, %p73
      %p75 = scmp.ne.s32.totalorder %s64, %s65
      %p76 = scmp.eq.s32.totalorder %s30, 0
      %p77 = por %p75, %p76
      %p78 = scmp.ne.s32.totalorder %s64, %s65
      %p79 = scmp.eq.s32.totalorder %s31, 1
      %p80 = por %p78, %p79
      %p82 = scmp.ne.s32.totalorder %s65, %s81
      %p83 = scmp.eq.s32.totalorder %s31, 0
      %p84 = por %p82, %p83
      %s85 = ssub.s32 %s25, %s32
      %p86 = scmp.eq.s32.totalorder %s85, 0
      %s88 = sadd.s32 %s87, 1
      %s89 = scalar_select %p86, %s87, %s88
      %p92 = pneg %p86
      %p93 = scmp.eq.s32.totalorder %s25, 1
      %p94 = por %p92, %p93
      %p95 = scmp.ne.s32.totalorder %s87, %s90
      %p96 = scmp.eq.s32.totalorder %s25, 0
      %p97 = por %p95, %p96
      %p98 = scmp.ne.s32.totalorder %s87, %s90
      %p99 = scmp.eq.s32.totalorder %s30, 1
      %p100 = por %p98, %p99
      %p101 = scmp.ne.s32.totalorder %s90, %s91
      %p102 = scmp.eq.s32.totalorder %s30, 0
      %p103 = por %p101, %p102
      %p104 = scmp.ne.s32.totalorder %s90, %s91
      %p105 = scmp.eq.s32.totalorder %s31, 1
      %p106 = por %p104, %p105
      %p108 = scmp.ne.s32.totalorder %s91, %s107
      %p109 = scmp.eq.s32.totalorder %s31, 0
      %p110 = por %p108, %p109
      %s112 = sadd.s32 %s111, 1
      %p115 = scmp.eq.s32.totalorder %s25, 1
      %p116 = scmp.ne.s32.totalorder %s111, %s113
      %p117 = scmp.eq.s32.totalorder %s25, 0
      %p118 = por %p116, %p117
      %p119 = scmp.ne.s32.totalorder %s111, %s113
      %p120 = scmp.eq.s32.totalorder %s30, 1
      %p121 = por %p119, %p120
      %p122 = scmp.ne.s32.totalorder %s113, %s114
      %p123 = scmp.eq.s32.totalorder %s30, 0
      %p124 = por %p122, %p123
      %p125 = scmp.ne.s32.totalorder %s113, %s114
      %p126 = scmp.eq.s32.totalorder %s31, 1
      %p127 = por %p125, %p126
      %p129 = scmp.ne.s32.totalorder %s114, %s128
      %p130 = scmp.eq.s32.totalorder %s31, 0
      %p131 = por %p129, %p130
      %s133 = sadd.s32 %s132, 1
      %p136 = scmp.eq.s32.totalorder %s25, 1
      %p137 = scmp.ne.s32.totalorder %s132, %s134
      %p138 = scmp.eq.s32.totalorder %s25, 0
      %p139 = por %p137, %p138
      %p140 = scmp.ne.s32.totalorder %s132, %s134
      %p141 = scmp.eq.s32.totalorder %s30, 1
      %p142 = por %p140, %p141
      %p143 = scmp.ne.s32.totalorder %s134, %s135
      %p144 = scmp.eq.s32.totalorder %s30, 0
      %p145 = por %p143, %p144
      %p146 = scmp.ne.s32.totalorder %s134, %s135
      %p147 = scmp.eq.s32.totalorder %s31, 1
      %p148 = por %p146, %p147
      %p150 = scmp.ne.s32.totalorder %s135, %s149
      %p151 = scmp.eq.s32.totalorder %s31, 0
      %p152 = por %p150, %p151
      %s154 = sadd.s32 %s153, 1
      %p157 = scmp.eq.s32.totalorder %s25, 1
      %p158 = scmp.ne.s32.totalorder %s153, %s155
      %p159 = scmp.eq.s32.totalorder %s25, 0
      %p160 = por %p158, %p159
      %p161 = scmp.ne.s32.totalorder %s153, %s155
      %p162 = scmp.eq.s32.totalorder %s30, 1
      %p163 = por %p161, %p162
      %p164 = scmp.ne.s32.totalorder %s155, %s156
      %p165 = scmp.eq.s32.totalorder %s30, 0
      %p166 = por %p164, %p165
      %p167 = scmp.ne.s32.totalorder %s155, %s156
      %p168 = scmp.eq.s32.totalorder %s31, 1
      %p169 = por %p167, %p168
      %p171 = scmp.ne.s32.totalorder %s156, %s170
      %p172 = scmp.eq.s32.totalorder %s31, 0
      %p173 = por %p171, %p172
      %s175 = sadd.s32 %s174, 1
      %p178 = scmp.eq.s32.totalorder %s25, 1
      %p179 = scmp.ne.s32.totalorder %s174, %s176
      %p180 = scmp.eq.s32.totalorder %s25, 0
      %p181 = por %p179, %p180
      %p182 = scmp.ne.s32.totalorder %s174, %s176
      %p183 = scmp.eq.s32.totalorder %s30, 1
      %p184 = por %p182, %p183
      %p185 = scmp.ne.s32.totalorder %s176, %s177
      %p186 = scmp.eq.s32.totalorder %s30, 0
      %p187 = por %p185, %p186
      %p188 = scmp.ne.s32.totalorder %s176, %s177
      %p189 = scmp.eq.s32.totalorder %s31, 1
      %p190 = por %p188, %p189
      %p192 = scmp.ne.s32.totalorder %s177, %s191
      %p193 = scmp.eq.s32.totalorder %s31, 0
      %p194 = por %p192, %p193
      %s196 = sadd.s32 %s195, 1
      %p199 = scmp.eq.s32.totalorder %s25, 1
      %p200 = scmp.ne.s32.totalorder %s195, %s197
      %p201 = scmp.eq.s32.totalorder %s25, 0
      %p202 = por %p200, %p201
      %p203 = scmp.ne.s32.totalorder %s195, %s197
      %p204 = scmp.eq.s32.totalorder %s30, 1
      %p205 = por %p203, %p204
      %p206 = scmp.ne.s32.totalorder %s197, %s198
      %p207 = scmp.eq.s32.totalorder %s30, 0
      %p208 = por %p206, %p207
      %p209 = scmp.ne.s32.totalorder %s197, %s198
      %p210 = scmp.eq.s32.totalorder %s31, 1
      %p211 = por %p209, %p210
      %p213 = scmp.ne.s32.totalorder %s198, %s212
      %p214 = scmp.eq.s32.totalorder %s31, 0
      %p215 = por %p213, %p214
      %s217 = sadd.s32 %s216, 1
      %p220 = scmp.eq.s32.totalorder %s25, 1
      %p221 = scmp.ne.s32.totalorder %s216, %s218
      %p222 = scmp.eq.s32.totalorder %s25, 0
      %p223 = por %p221, %p222
      %p224 = scmp.ne.s32.totalorder %s216, %s218
      %p225 = scmp.eq.s32.totalorder %s30, 1
      %p226 = por %p224, %p225
      %p227 = scmp.ne.s32.totalorder %s218, %s219
      %p228 = scmp.eq.s32.totalorder %s30, 0
      %p229 = por %p227, %p228
      %p230 = scmp.ne.s32.totalorder %s218, %s219
      %p231 = scmp.eq.s32.totalorder %s31, 1
      %p232 = por %p230, %p231
      %p234 = scmp.ne.s32.totalorder %s219, %s233
      %p235 = scmp.eq.s32.totalorder %s31, 0
      %p236 = por %p234, %p235
      %s238 = sadd.s32 %s237, 1
      %p241 = scmp.eq.s32.totalorder %s25, 1
      %p242 = scmp.ne.s32.totalorder %s237, %s239
      %p243 = scmp.eq.s32.totalorder %s25, 0
      %p244 = por %p242, %p243
      %p245 = scmp.ne.s32.totalorder %s237, %s239
      %p246 = scmp.eq.s32.totalorder %s30, 1
      %p247 = por %p245, %p246
      %p248 = scmp.ne.s32.totalorder %s239, %s240
      %p249 = scmp.eq.s32.totalorder %s30, 0
      %p250 = por %p248, %p249
      %p251 = scmp.ne.s32.totalorder %s239, %s240
      %p252 = scmp.eq.s32.totalorder %s31, 1
      %p253 = por %p251, %p252
      %p255 = scmp.ne.s32.totalorder %s240, %s254
      %p256 = scmp.eq.s32.totalorder %s31, 0
      %p257 = por %p255, %p256
      %s259 = sadd.s32 %s258, 1
      %p262 = scmp.eq.s32.totalorder %s25, 1
      %p263 = scmp.ne.s32.totalorder %s258, %s260
      %p264 = scmp.eq.s32.totalorder %s25, 0
      %p265 = por %p263, %p264
      %p266 = scmp.ne.s32.totalorder %s258, %s260
      %p267 = scmp.eq.s32.totalorder %s30, 1
      %p268 = por %p266, %p267
      %p269 = scmp.ne.s32.totalorder %s260, %s261
      %p270 = scmp.eq.s32.totalorder %s30, 0
      %p271 = por %p269, %p270
      %p272 = scmp.ne.s32.totalorder %s260, %s261
      %p273 = scmp.eq.s32.totalorder %s31, 1
      %p274 = por %p272, %p273
      %p276 = scmp.ne.s32.totalorder %s261, %s275
      %p277 = scmp.eq.s32.totalorder %s31, 0
      %p278 = por %p276, %p277
      %s280 = sadd.s32 %s279, 1
      %p283 = scmp.eq.s32.totalorder %s25, 1
      %p284 = scmp.ne.s32.totalorder %s279, %s281
      %p285 = scmp.eq.s32.totalorder %s25, 0
      %p286 = por %p284, %p285
      %p287 = scmp.ne.s32.totalorder %s279, %s281
      %p288 = scmp.eq.s32.totalorder %s30, 1
      %p289 = por %p287, %p288
      %p290 = scmp.ne.s32.totalorder %s281, %s282
      %p291 = scmp.eq.s32.totalorder %s30, 0
      %p292 = por %p290, %p291
      %p293 = scmp.ne.s32.totalorder %s281, %s282
      %p294 = scmp.eq.s32.totalorder %s31, 1
      %p295 = por %p293, %p294
      %p297 = scmp.ne.s32.totalorder %s282, %s296
      %p298 = scmp.eq.s32.totalorder %s31, 0
      %p299 = por %p297, %p298
      %s301 = sadd.s32 %s300, 1
      %p304 = scmp.eq.s32.totalorder %s25, 1
      %p305 = scmp.ne.s32.totalorder %s300, %s302
      %p306 = scmp.eq.s32.totalorder %s25, 0
      %p307 = por %p305, %p306
      %p308 = scmp.ne.s32.totalorder %s300, %s302
      %p309 = scmp.eq.s32.totalorder %s30, 1
      %p310 = por %p308, %p309
      %p311 = scmp.ne.s32.totalorder %s302, %s303
      %p312 = scmp.eq.s32.totalorder %s30, 0
      %p313 = por %p311, %p312
      %p314 = scmp.ne.s32.totalorder %s302, %s303
      %p315 = scmp.eq.s32.totalorder %s31, 1
      %p316 = por %p314, %p315
      %p318 = scmp.ne.s32.totalorder %s303, %s317
      %p319 = scmp.eq.s32.totalorder %s31, 0
      %p320 = por %p318, %p319
      %s321 = ssub.s32 %s25, %s32
      %p322 = scmp.eq.s32.totalorder %s321, 0
      %s324 = sadd.s32 %s323, 1
      %s325 = scalar_select %p322, %s323, %s324
      %p328 = pneg %p322
      %p329 = scmp.eq.s32.totalorder %s25, 1
      %p330 = por %p328, %p329
      %p331 = scmp.ne.s32.totalorder %s323, %s326
      %p332 = scmp.eq.s32.totalorder %s25, 0
      %p333 = por %p331, %p332
      %p334 = scmp.ne.s32.totalorder %s323, %s326
      %p335 = scmp.eq.s32.totalorder %s30, 1
      %p336 = por %p334, %p335
      %p337 = scmp.ne.s32.totalorder %s326, %s327
      %p338 = scmp.eq.s32.totalorder %s30, 0
      %p339 = por %p337, %p338
      %p340 = scmp.ne.s32.totalorder %s326, %s327
      %p341 = scmp.eq.s32.totalorder %s31, 1
      %p342 = por %p340, %p341
      %p344 = scmp.ne.s32.totalorder %s327, %s343
      %p345 = scmp.eq.s32.totalorder %s31, 0
      %p346 = por %p344, %p345
      %p347 = scmp.le.s32.totalorder 1, %s25
      %p348 = scmp.lt.s32.totalorder %s25, 3
      %p349 = pnand %p347, %p348
      %p350 = pneg %p349
      // Predicated region
      $region9: #{multi_head_attention.1} parent=5 // pred_check
        _
      $region10: #{multi_head_attention.1} parent=5 // pred_check_branch
        %352 = sbr.rel (%p349) target = $region12
      $region11: #{multi_head_attention.1} parent=5 // pred_region
        %s353 = ssub.s32 %s25, 1
        // Predicated region
        $region13: #{multi_head_attention.1} parent=11 // pred_check
          %p354 = pneg %p124
        $region14: #{multi_head_attention.1} parent=11 // pred_check_branch
          %356 = sbr.rel (%p354) target = $region16
        $region15: #{multi_head_attention.1} parent=11 // pred_region
          _
        $region16: #{multi_head_attention.1} parent=11 // pred_fallthru
          _
        // Predicated region
        $region17: #{multi_head_attention.1} parent=11 // pred_check
          %p357 = pneg %p145
        $region18: #{multi_head_attention.1} parent=11 // pred_check_branch
          %359 = sbr.rel (%p357) target = $region20
        $region19: #{multi_head_attention.1} parent=11 // pred_region
          _
        $region20: #{multi_head_attention.1} parent=11 // pred_fallthru
          _
        // Predicated region
        $region21: #{multi_head_attention.1} parent=11 // pred_check
          %p360 = pneg %p166
        $region22: #{multi_head_attention.1} parent=11 // pred_check_branch
          %362 = sbr.rel (%p360) target = $region24
        $region23: #{multi_head_attention.1} parent=11 // pred_region
          %s364 = ssub.s32 1024, 1024
          %365 = vsyncadd [#allocation3], %s364
          %s366 = sshll.u32 [#allocation2], 4
          %s367 = int_to_ptr.vmem [resolvable:$true] %s366
          %372 = dma.hbm_to_vmem [thread:$0]  %s5, 1024, %s367, [#allocation3], 64, 64, 4
        $region24: #{multi_head_attention.1} parent=11 // pred_fallthru
          _
        // Predicated region
        $region25: #{multi_head_attention.1} parent=11 // pred_check
          %p373 = pneg %p187
        $region26: #{multi_head_attention.1} parent=11 // pred_check_branch
          %375 = sbr.rel (%p373) target = $region28
        $region27: #{multi_head_attention.1} parent=11 // pred_region
          %s377 = ssub.s32 16, 16
          %378 = vsyncadd [#allocation6], %s377
          %s380 = sshll.u32 [#allocation5], 4
          %s381 = int_to_ptr.vmem [resolvable:$true] %s380
          %383 = dma.hbm_to_vmem [thread:$0]  %s6, 16, %s381, [#allocation6]
        $region28: #{multi_head_attention.1} parent=11 // pred_fallthru
          _
        // Predicated region
        $region29: #{multi_head_attention.1} parent=11 // pred_check
          %p384 = pneg %p208
        $region30: #{multi_head_attention.1} parent=11 // pred_check_branch
          %386 = sbr.rel (%p384) target = $region32
        $region31: #{multi_head_attention.1} parent=11 // pred_region
          %s388 = ssub.s32 1024, 1024
          %389 = vsyncadd [#allocation6], %s388
          %s390 = sshll.u32 [#allocation7], 4
          %s391 = int_to_ptr.vmem [resolvable:$true] %s390
          %396 = dma.hbm_to_vmem [thread:$0]  %s7, 1024, %s391, [#allocation6], 64, 64, 4
        $region32: #{multi_head_attention.1} parent=11 // pred_fallthru
          _
        // Predicated region
        $region33: #{multi_head_attention.1} parent=11 // pred_check
          %p397 = pneg %p229
        $region34: #{multi_head_attention.1} parent=11 // pred_check_branch
          %399 = sbr.rel (%p397) target = $region36
        $region35: #{multi_head_attention.1} parent=11 // pred_region
          %s401 = ssub.s32 16, 16
          %402 = vsyncadd [#allocation9], %s401
          %s404 = sshll.u32 [#allocation8], 4
          %s405 = int_to_ptr.vmem [resolvable:$true] %s404
          %407 = dma.hbm_to_vmem [thread:$0]  %s8, 16, %s405, [#allocation9]
        $region36: #{multi_head_attention.1} parent=11 // pred_fallthru
          _
        // Predicated region
        $region37: #{multi_head_attention.1} parent=11 // pred_check
          %p408 = pneg %p250
        $region38: #{multi_head_attention.1} parent=11 // pred_check_branch
          %410 = sbr.rel (%p408) target = $region40
        $region39: #{multi_head_attention.1} parent=11 // pred_region
          _
        $region40: #{multi_head_attention.1} parent=11 // pred_fallthru
          _
        // Predicated region
        $region41: #{multi_head_attention.1} parent=11 // pred_check
          %p411 = pneg %p271
        $region42: #{multi_head_attention.1} parent=11 // pred_check_branch
          %413 = sbr.rel (%p411) target = $region44
        $region43: #{multi_head_attention.1} parent=11 // pred_region
          _
        $region44: #{multi_head_attention.1} parent=11 // pred_fallthru
          _
        // Predicated region
        $region45: #{multi_head_attention.1} parent=11 // pred_check
          %p414 = pneg %p292
        $region46: #{multi_head_attention.1} parent=11 // pred_check_branch
          %416 = sbr.rel (%p414) target = $region48
        $region47: #{multi_head_attention.1} parent=11 // pred_region
          _
        $region48: #{multi_head_attention.1} parent=11 // pred_fallthru
          _
        // Predicated region
        $region49: #{multi_head_attention.1} parent=11 // pred_check
          %p417 = pneg %p313
        $region50: #{multi_head_attention.1} parent=11 // pred_check_branch
          %419 = sbr.rel (%p417) target = $region52
        $region51: #{multi_head_attention.1} parent=11 // pred_region
          _
        $region52: #{multi_head_attention.1} parent=11 // pred_fallthru
          _
      $region12: #{multi_head_attention.1} parent=5 // pred_fallthru
        _
      %p420 = scmp.lt.s32.totalorder %s25, 2
      // Predicated region
      $region53: #{multi_head_attention.1} parent=5 // pred_check
        %p421 = pneg %p420
      $region54: #{multi_head_attention.1} parent=5 // pred_check_branch
        %423 = sbr.rel (%p421) target = $region56
      $region55: #{multi_head_attention.1} parent=5 // pred_region
        // Predicated region
        $region57: #{multi_head_attention.1} parent=55 // pred_check
          %p424 = pneg %p45
        $region58: #{multi_head_attention.1} parent=55 // pred_check_branch
          %426 = sbr.rel (%p424) target = $region60
        $region59: #{multi_head_attention.1} parent=55 // pred_region
          %p427 = scmp.lt.s32.totalorder %s25, 1
          %s428 = scalar_select %p427, %s25, 1
          %s429 = smul.addr %s428, 8
          %s430 = scalar_lea.vmem %s0, %s429
        $region60: #{multi_head_attention.1} parent=55 // pred_fallthru
          _
        // Predicated region
        $region61: #{multi_head_attention.1} parent=55 // pred_check
          %p431 = pneg %p71
        $region62: #{multi_head_attention.1} parent=55 // pred_check_branch
          %433 = sbr.rel (%p431) target = $region64
        $region63: #{multi_head_attention.1} parent=55 // pred_region
          %p434 = scmp.lt.s32.totalorder %s25, 1
          %s435 = scalar_select %p434, %s25, 1
          %s436 = smul.addr %s435, 8
          %s437 = scalar_lea.vmem %s1, %s436
        $region64: #{multi_head_attention.1} parent=55 // pred_fallthru
          _
        // Predicated region
        $region65: #{multi_head_attention.1} parent=55 // pred_check
          %p438 = pneg %p97
        $region66: #{multi_head_attention.1} parent=55 // pred_check_branch
          %440 = sbr.rel (%p438) target = $region68
        $region67: #{multi_head_attention.1} parent=55 // pred_region
          %p441 = scmp.lt.s32.totalorder %s25, 1
          %s442 = scalar_select %p441, %s25, 1
          %s443 = smul.addr %s442, 8
          %s444 = scalar_lea.vmem %s2, %s443
        $region68: #{multi_head_attention.1} parent=55 // pred_fallthru
          _
      $region56: #{multi_head_attention.1} parent=5 // pred_fallthru
        _
      %p445 = scmp.le.s32.totalorder 1, %s25
      %p446 = scmp.lt.s32.totalorder %s25, 3
      %p447 = pnand %p445, %p446
      %p448 = pneg %p447
      // Predicated region
      $region69: #{multi_head_attention.1} parent=5 // pred_check
        _
      $region70: #{multi_head_attention.1} parent=5 // pred_check_branch
        %450 = sbr.rel (%p447) target = $region72
      $region71: #{multi_head_attention.1} parent=5 // pred_region
        %s451 = ssub.s32 %s25, 1
        // Predicated region
        $region73: #{multi_head_attention.1} parent=71 // pred_check
          %p452 = pneg %p166
        $region74: #{multi_head_attention.1} parent=71 // pred_check_branch
          %454 = sbr.rel (%p452) target = $region76
        $region75: #{multi_head_attention.1} parent=71 // pred_region
          %455 = dma.done [#allocation3], 1024
        $region76: #{multi_head_attention.1} parent=71 // pred_fallthru
          _
        // Predicated region
        $region77: #{multi_head_attention.1} parent=71 // pred_check
          %p456 = pneg %p187
        $region78: #{multi_head_attention.1} parent=71 // pred_check_branch
          %458 = sbr.rel (%p456) target = $region80
        $region79: #{multi_head_attention.1} parent=71 // pred_region
          %459 = dma.done [#allocation6], 16
        $region80: #{multi_head_attention.1} parent=71 // pred_fallthru
          _
        // Predicated region
        $region81: #{multi_head_attention.1} parent=71 // pred_check
          %p460 = pneg %p208
        $region82: #{multi_head_attention.1} parent=71 // pred_check_branch
          %462 = sbr.rel (%p460) target = $region84
        $region83: #{multi_head_attention.1} parent=71 // pred_region
          %463 = dma.done [#allocation6], 1024
        $region84: #{multi_head_attention.1} parent=71 // pred_fallthru
          _
        // Predicated region
        $region85: #{multi_head_attention.1} parent=71 // pred_check
          %p464 = pneg %p229
        $region86: #{multi_head_attention.1} parent=71 // pred_check_branch
          %466 = sbr.rel (%p464) target = $region88
        $region87: #{multi_head_attention.1} parent=71 // pred_region
          %467 = dma.done [#allocation9], 16
        $region88: #{multi_head_attention.1} parent=71 // pred_fallthru
          _
        %p468 = scmp.lt.s32.totalorder %s30, 1
        %s469 = scalar_select %p468, %s30, 1
        %s470 = smul.addr %s469, 8
        %s471 = scalar_lea.vmem %s0, %s470
        %p472 = pneg %p51
        %p473 = pneg %p48
        %p474 = scmp.lt.s32.totalorder %s30, 1
        %s475 = scalar_select %p474, %s30, 1
        %s476 = smul.addr %s475, 8
        %s477 = scalar_lea.vmem %s1, %s476
        %p478 = pneg %p77
        %p479 = pneg %p74
        %p480 = scmp.lt.s32.totalorder %s30, 1
        %s481 = scalar_select %p480, %s30, 1
        %s482 = smul.addr %s481, 8
        %s483 = scalar_lea.vmem %s2, %s482
        %p484 = pneg %p103
        %p485 = pneg %p100
        %p486 = pneg %p124
        %p487 = pneg %p121
        %p488 = pneg %p145
        %p489 = pneg %p142
        %p490 = pneg %p166
        %p491 = pneg %p163
        %p492 = pneg %p187
        %p493 = pneg %p184
        %p494 = pneg %p208
        %p495 = pneg %p205
        %p496 = pneg %p229
        %p497 = pneg %p226
        %p498 = pneg %p250
        %p499 = pneg %p247
        %p500 = pneg %p271
        %p501 = pneg %p268
        %p502 = pneg %p292
        %p503 = pneg %p289
        %p504 = pneg %p313
        %p505 = pneg %p310
        %p506 = pneg %p339
        %p507 = pneg %p336
        %s508 = sand.u32 %s326, 1
        %s509 = scalar_lea.sflag [#allocation4], %s508
        %s510 = sand.u32 %s326, 1
        %s511 = smul.addr %s510, 8
        %s512 = scalar_lea.vmem [#allocation10], %s511
        %p513 = scmp.lt.s32.totalorder %s30, 1
        %s514 = scalar_select %p513, %s30, 1
        %s515 = smul.addr %s514, 8
        %s516 = scalar_lea.vmem %s0, %s515
        %p517 = scmp.lt.s32.totalorder %s30, 1
        %s518 = scalar_select %p517, %s30, 1
        %s519 = smul.addr %s518, 8
        %s520 = scalar_lea.vmem %s1, %s519
        %p521 = scmp.lt.s32.totalorder %s30, 1
        %s522 = scalar_select %p521, %s30, 1
        %s523 = smul.addr %s522, 8
        %s524 = scalar_lea.vmem %s2, %s523
        %v526 = vld [vmem:[%s516] sm:$0xff]
        %v527 = vpack.c.bf16 %v526, %v526
        %v528 = vld [vmem:[%s520] sm:$0xff]
        %v529 = vpack.c.bf16 %v528, %v528
        %v530 = vld [vmem:[%s524] sm:$0xff]
        %v531 = vpack.c.bf16 %v530, %v530
        %v532 = vld [vmem:[%s3] sm:$0xf]
        %v533 = vld [vmem:[%s3 + $0x4] sm:$0xf]
        %v534 = vld [vmem:[%s3 + $0x8] sm:$0xf]
        %v535 = vld [vmem:[%s3 + $0xc] sm:$0xf]
        %v536 = vld [vmem:[%s3 + $0x10] sm:$0xf]
        %v537 = vld [vmem:[%s3 + $0x14] sm:$0xf]
        %v538 = vld [vmem:[%s3 + $0x18] sm:$0xf]
        %v539 = vld [vmem:[%s3 + $0x1c] sm:$0xf]
        %v540 = vld [vmem:[%s3 + $0x20] sm:$0xf]
        %v541 = vld [vmem:[%s3 + $0x24] sm:$0xf]
        %v542 = vld [vmem:[%s3 + $0x28] sm:$0xf]
        %v543 = vld [vmem:[%s3 + $0x2c] sm:$0xf]
        %v544 = vld [vmem:[%s3 + $0x30] sm:$0xf]
        %v545 = vld [vmem:[%s3 + $0x34] sm:$0xf]
        %v546 = vld [vmem:[%s3 + $0x38] sm:$0xf]
        %v547 = vld [vmem:[%s3 + $0x3c] sm:$0xf]
        %v548 = vld [vmem:[%s4] sm:$0x1]
        %v550 = vlaneseq
        %v551 = vshrl.u32 %v550, 7
        %v552 = vsub.s32 0, %v551
        %v553 = vrot.slane %v548, %v552
        %v571 = vunpack.c.l.b16 %v532
        %v572 = vunpack.c.l.b16 %v533
        %v573 = vunpack.c.l.b16 %v534
        %v574 = vunpack.c.l.b16 %v535
        %v575 = vunpack.c.l.b16 %v536
        %v576 = vunpack.c.l.b16 %v537
        %v577 = vunpack.c.l.b16 %v538
        %v578 = vunpack.c.l.b16 %v539
        %v579 = vunpack.c.l.b16 %v540
        %v580 = vunpack.c.l.b16 %v541
        %v581 = vunpack.c.l.b16 %v542
        %v582 = vunpack.c.l.b16 %v543
        %v583 = vunpack.c.l.b16 %v544
        %v584 = vunpack.c.l.b16 %v545
        %v585 = vunpack.c.l.b16 %v546
        %v586 = vunpack.c.l.b16 %v547
        %v587 = vpack.c.b16 %v572, %v571
        %v588 = vpack.c.b16 %v574, %v573
        %v589 = vpack.c.b16 %v576, %v575
        %v590 = vpack.c.b16 %v578, %v577
        %v591 = vpack.c.b16 %v580, %v579
        %v592 = vpack.c.b16 %v582, %v581
        %v593 = vpack.c.b16 %v584, %v583
        %v594 = vpack.c.b16 %v586, %v585
        %603 = vmatprep.subr.bf16.mxu0 0
        %604 = vmatpush1.bf16.msra.mxu0 %v587
        %605 = vmatprep.subr.bf16.mxu0 0
        %606 = vmatpush1.bf16.msra.mxu0 %v588
        %607 = vmatprep.subr.bf16.mxu0 0
        %608 = vmatpush1.bf16.msra.mxu0 %v589
        %609 = vmatprep.subr.bf16.mxu0 0
        %610 = vmatpush1.bf16.msra.mxu0 %v590
        %611 = vmatprep.subr.bf16.mxu0 0
        %612 = vmatpush1.bf16.msra.mxu0 %v591
        %613 = vmatprep.subr.bf16.mxu0 0
        %614 = vmatpush1.bf16.msra.mxu0 %v592
        %615 = vmatprep.subr.bf16.mxu0 0
        %616 = vmatpush1.bf16.msra.mxu0 %v593
        %617 = vmatprep.subr.bf16.mxu0 0
        %618 = vmatpush1.bf16.msra.mxu0 %v594
        %619 = vmatprep.subr.bf16.mxu0 0
        %620 = vmatpush1.bf16.msra.mxu0 0
        %621 = vmatprep.subr.bf16.mxu0 0
        %622 = vmatpush1.bf16.msra.mxu0 0
        %623 = vmatprep.subr.bf16.mxu0 0
        %624 = vmatpush1.bf16.msra.mxu0 0
        %625 = vmatprep.subr.bf16.mxu0 0
        %626 = vmatpush1.bf16.msra.mxu0 0
        %627 = vmatprep.subr.bf16.mxu0 0
        %628 = vmatpush1.bf16.msra.mxu0 0
        %629 = vmatprep.subr.bf16.mxu0 0
        %630 = vmatpush1.bf16.msra.mxu0 0
        %631 = vmatprep.subr.bf16.mxu0 0
        %632 = vmatpush1.bf16.msra.mxu0 0
        %633 = vmatprep.subr.bf16.mxu0 0
        %634 = vmatpush1.bf16.msra.mxu0 0
        %635 = vmatprep.mubr.bf16.mxu0 0
        %636 = vmatmul.mubr.bf16.gmra.mrb[0].mxu0 %v527
        %v637 = vpop.f32.mrb[0].mxu0
        %v638 = vadd.f32 %v553, %v637
        %v639 = vpop.f32.mrb[0].mxu0
        %v640 = vpop.f32.mrb[0].mxu0
        %v641 = vpop.f32.mrb[0].mxu0
        %642 = vdwg.mxu0
        %v643 = vpack.c.bf16 %v638, %v638
        %v644 = vld [vmem:[#allocation2] sm:$0xf]
        %v645 = vld [vmem:[#allocation2 + $0x4] sm:$0xf]
        %v646 = vld [vmem:[#allocation2 + $0x8] sm:$0xf]
        %v647 = vld [vmem:[#allocation2 + $0xc] sm:$0xf]
        %v648 = vld [vmem:[#allocation2 + $0x10] sm:$0xf]
        %v649 = vld [vmem:[#allocation2 + $0x14] sm:$0xf]
        %v650 = vld [vmem:[#allocation2 + $0x18] sm:$0xf]
        %v651 = vld [vmem:[#allocation2 + $0x1c] sm:$0xf]
        %v652 = vld [vmem:[#allocation2 + $0x20] sm:$0xf]
        %v653 = vld [vmem:[#allocation2 + $0x24] sm:$0xf]
        %v654 = vld [vmem:[#allocation2 + $0x28] sm:$0xf]
        %v655 = vld [vmem:[#allocation2 + $0x2c] sm:$0xf]
        %v656 = vld [vmem:[#allocation2 + $0x30] sm:$0xf]
        %v657 = vld [vmem:[#allocation2 + $0x34] sm:$0xf]
        %v658 = vld [vmem:[#allocation2 + $0x38] sm:$0xf]
        %v659 = vld [vmem:[#allocation2 + $0x3c] sm:$0xf]
        %v660 = vld [vmem:[#allocation5] sm:$0x1]
        %v662 = vlaneseq
        %v663 = vshrl.u32 %v662, 7
        %v664 = vsub.s32 0, %v663
        %v665 = vrot.slane %v660, %v664
        %v683 = vunpack.c.l.b16 %v644
        %v684 = vunpack.c.l.b16 %v645
        %v685 = vunpack.c.l.b16 %v646
        %v686 = vunpack.c.l.b16 %v647
        %v687 = vunpack.c.l.b16 %v648
        %v688 = vunpack.c.l.b16 %v649
        %v689 = vunpack.c.l.b16 %v650
        %v690 = vunpack.c.l.b16 %v651
        %v691 = vunpack.c.l.b16 %v652
        %v692 = vunpack.c.l.b16 %v653
        %v693 = vunpack.c.l.b16 %v654
        %v694 = vunpack.c.l.b16 %v655
        %v695 = vunpack.c.l.b16 %v656
        %v696 = vunpack.c.l.b16 %v657
        %v697 = vunpack.c.l.b16 %v658
        %v698 = vunpack.c.l.b16 %v659
        %v699 = vpack.c.b16 %v684, %v683
        %v700 = vpack.c.b16 %v686, %v685
        %v701 = vpack.c.b16 %v688, %v687
        %v702 = vpack.c.b16 %v690, %v689
        %v703 = vpack.c.b16 %v692, %v691
        %v704 = vpack.c.b16 %v694, %v693
        %v705 = vpack.c.b16 %v696, %v695
        %v706 = vpack.c.b16 %v698, %v697
        %715 = vmatprep.subr.bf16.mxu0 0
        %716 = vmatpush1.bf16.msra.mxu0 %v699
        %717 = vmatprep.subr.bf16.mxu0 0
        %718 = vmatpush1.bf16.msra.mxu0 %v700
        %719 = vmatprep.subr.bf16.mxu0 0
        %720 = vmatpush1.bf16.msra.mxu0 %v701
        %721 = vmatprep.subr.bf16.mxu0 0
        %722 = vmatpush1.bf16.msra.mxu0 %v702
        %723 = vmatprep.subr.bf16.mxu0 0
        %724 = vmatpush1.bf16.msra.mxu0 %v703
        %725 = vmatprep.subr.bf16.mxu0 0
        %726 = vmatpush1.bf16.msra.mxu0 %v704
        %727 = vmatprep.subr.bf16.mxu0 0
        %728 = vmatpush1.bf16.msra.mxu0 %v705
        %729 = vmatprep.subr.bf16.mxu0 0
        %730 = vmatpush1.bf16.msra.mxu0 %v706
        %731 = vmatprep.subr.bf16.mxu0 0
        %732 = vmatpush1.bf16.msra.mxu0 0
        %733 = vmatprep.subr.bf16.mxu0 0
        %734 = vmatpush1.bf16.msra.mxu0 0
        %735 = vmatprep.subr.bf16.mxu0 0
        %736 = vmatpush1.bf16.msra.mxu0 0
        %737 = vmatprep.subr.bf16.mxu0 0
        %738 = vmatpush1.bf16.msra.mxu0 0
        %739 = vmatprep.subr.bf16.mxu0 0
        %740 = vmatpush1.bf16.msra.mxu0 0
        %741 = vmatprep.subr.bf16.mxu0 0
        %742 = vmatpush1.bf16.msra.mxu0 0
        %743 = vmatprep.subr.bf16.mxu0 0
        %744 = vmatpush1.bf16.msra.mxu0 0
        %745 = vmatprep.subr.bf16.mxu0 0
        %746 = vmatpush1.bf16.msra.mxu0 0
        %747 = vmatprep.mubr.bf16.mxu0 0
        %748 = vmatmul.mubr.bf16.gmra.mrb[0].mxu0 %v529
        %v749 = vpop.f32.mrb[0].mxu0
        %v750 = vadd.f32 %v665, %v749
        %v751 = vpop.f32.mrb[0].mxu0
        %v752 = vpop.f32.mrb[0].mxu0
        %v753 = vpop.f32.mrb[0].mxu0
        %754 = vdwg.mxu0
        %v755 = vpack.c.bf16 %v750, %v750
        %v756 = vld [vmem:[#allocation7] sm:$0xf]
        %v757 = vld [vmem:[#allocation7 + $0x4] sm:$0xf]
        %v758 = vld [vmem:[#allocation7 + $0x8] sm:$0xf]
        %v759 = vld [vmem:[#allocation7 + $0xc] sm:$0xf]
        %v760 = vld [vmem:[#allocation7 + $0x10] sm:$0xf]
        %v761 = vld [vmem:[#allocation7 + $0x14] sm:$0xf]
        %v762 = vld [vmem:[#allocation7 + $0x18] sm:$0xf]
        %v763 = vld [vmem:[#allocation7 + $0x1c] sm:$0xf]
        %v764 = vld [vmem:[#allocation7 + $0x20] sm:$0xf]
        %v765 = vld [vmem:[#allocation7 + $0x24] sm:$0xf]
        %v766 = vld [vmem:[#allocation7 + $0x28] sm:$0xf]
        %v767 = vld [vmem:[#allocation7 + $0x2c] sm:$0xf]
        %v768 = vld [vmem:[#allocation7 + $0x30] sm:$0xf]
        %v769 = vld [vmem:[#allocation7 + $0x34] sm:$0xf]
        %v770 = vld [vmem:[#allocation7 + $0x38] sm:$0xf]
        %v771 = vld [vmem:[#allocation7 + $0x3c] sm:$0xf]
        %v772 = vld [vmem:[#allocation8] sm:$0x1]
        %v774 = vlaneseq
        %v775 = vshrl.u32 %v774, 7
        %v776 = vsub.s32 0, %v775
        %v777 = vrot.slane %v772, %v776
        %v795 = vunpack.c.l.b16 %v756
        %v796 = vunpack.c.l.b16 %v757
        %v797 = vunpack.c.l.b16 %v758
        %v798 = vunpack.c.l.b16 %v759
        %v799 = vunpack.c.l.b16 %v760
        %v800 = vunpack.c.l.b16 %v761
        %v801 = vunpack.c.l.b16 %v762
        %v802 = vunpack.c.l.b16 %v763
        %v803 = vunpack.c.l.b16 %v764
        %v804 = vunpack.c.l.b16 %v765
        %v805 = vunpack.c.l.b16 %v766
        %v806 = vunpack.c.l.b16 %v767
        %v807 = vunpack.c.l.b16 %v768
        %v808 = vunpack.c.l.b16 %v769
        %v809 = vunpack.c.l.b16 %v770
        %v810 = vunpack.c.l.b16 %v771
        %v811 = vpack.c.b16 %v796, %v795
        %v812 = vpack.c.b16 %v798, %v797
        %v813 = vpack.c.b16 %v800, %v799
        %v814 = vpack.c.b16 %v802, %v801
        %v815 = vpack.c.b16 %v804, %v803
        %v816 = vpack.c.b16 %v806, %v805
        %v817 = vpack.c.b16 %v808, %v807
        %v818 = vpack.c.b16 %v810, %v809
        %827 = vmatprep.subr.bf16.mxu0 0
        %828 = vmatpush1.bf16.msra.mxu0 %v811
        %829 = vmatprep.subr.bf16.mxu0 0
        %830 = vmatpush1.bf16.msra.mxu0 %v812
        %831 = vmatprep.subr.bf16.mxu0 0
        %832 = vmatpush1.bf16.msra.mxu0 %v813
        %833 = vmatprep.subr.bf16.mxu0 0
        %834 = vmatpush1.bf16.msra.mxu0 %v814
        %835 = vmatprep.subr.bf16.mxu0 0
        %836 = vmatpush1.bf16.msra.mxu0 %v815
        %837 = vmatprep.subr.bf16.mxu0 0
        %838 = vmatpush1.bf16.msra.mxu0 %v816
        %839 = vmatprep.subr.bf16.mxu0 0
        %840 = vmatpush1.bf16.msra.mxu0 %v817
        %841 = vmatprep.subr.bf16.mxu0 0
        %842 = vmatpush1.bf16.msra.mxu0 %v818
        %843 = vmatprep.subr.bf16.mxu0 0
        %844 = vmatpush1.bf16.msra.mxu0 0
        %845 = vmatprep.subr.bf16.mxu0 0
        %846 = vmatpush1.bf16.msra.mxu0 0
        %847 = vmatprep.subr.bf16.mxu0 0
        %848 = vmatpush1.bf16.msra.mxu0 0
        %849 = vmatprep.subr.bf16.mxu0 0
        %850 = vmatpush1.bf16.msra.mxu0 0
        %851 = vmatprep.subr.bf16.mxu0 0
        %852 = vmatpush1.bf16.msra.mxu0 0
        %853 = vmatprep.subr.bf16.mxu0 0
        %854 = vmatpush1.bf16.msra.mxu0 0
        %855 = vmatprep.subr.bf16.mxu0 0
        %856 = vmatpush1.bf16.msra.mxu0 0
        %857 = vmatprep.subr.bf16.mxu0 0
        %858 = vmatpush1.bf16.msra.mxu0 0
        %859 = vmatprep.mubr.bf16.mxu0 0
        %860 = vmatmul.mubr.bf16.gmra.mrb[0].mxu0 %v531
        %v861 = vpop.f32.mrb[0].mxu0
        %v862 = vadd.f32 %v777, %v861
        %v863 = vpop.f32.mrb[0].mxu0
        %v864 = vpop.f32.mrb[0].mxu0
        %v865 = vpop.f32.mrb[0].mxu0
        %866 = vdwg.mxu0
        %v867 = vpack.c.bf16 %v862, %v862
        %868 = vmatprep.subr.bf16.mxu0 0
        %869 = vmatpush1.bf16.xpose.msra.mxu0 %v755
        %870 = vmatprep.subr.bf16.mxu0 0
        %871 = vmatpush1.bf16.xpose.msra.mxu0 0
        %872 = vmatprep.subr.bf16.mxu0 0
        %873 = vmatpush1.bf16.xpose.msra.mxu0 0
        %874 = vmatprep.subr.bf16.mxu0 0
        %875 = vmatpush1.bf16.xpose.msra.mxu0 0
        %876 = vmatprep.subr.bf16.mxu0 0
        %877 = vmatpush1.bf16.xpose.msra.mxu0 0
        %878 = vmatprep.subr.bf16.mxu0 0
        %879 = vmatpush1.bf16.xpose.msra.mxu0 0
        %880 = vmatprep.subr.bf16.mxu0 0
        %881 = vmatpush1.bf16.xpose.msra.mxu0 0
        %882 = vmatprep.subr.bf16.mxu0 0
        %883 = vmatpush1.bf16.xpose.msra.mxu0 0
        %884 = vmatprep.subr.bf16.mxu0 0
        %885 = vmatpush1.bf16.xpose.msra.mxu0 0
        %886 = vmatprep.subr.bf16.mxu0 0
        %887 = vmatpush1.bf16.xpose.msra.mxu0 0
        %888 = vmatprep.subr.bf16.mxu0 0
        %889 = vmatpush1.bf16.xpose.msra.mxu0 0
        %890 = vmatprep.subr.bf16.mxu0 0
        %891 = vmatpush1.bf16.xpose.msra.mxu0 0
        %892 = vmatprep.subr.bf16.mxu0 0
        %893 = vmatpush1.bf16.xpose.msra.mxu0 0
        %894 = vmatprep.subr.bf16.mxu0 0
        %895 = vmatpush1.bf16.xpose.msra.mxu0 0
        %896 = vmatprep.subr.bf16.mxu0 0
        %897 = vmatpush1.bf16.xpose.msra.mxu0 0
        %898 = vmatprep.subr.bf16.mxu0 0
        %899 = vmatpush1.bf16.xpose.msra.mxu0 0
        %900 = vmatprep.mubr.bf16.mxu0 0
        %901 = vmatmul.mubr.bf16.gmra.mrb[0].mxu0 %v643
        %v902 = vpop.f32.mrb[0].mxu0
        %v903 = vadd.f32 0.0, %v902
        %v904 = vpop.f32.mrb[0].mxu0
        %v905 = vpop.f32.mrb[0].mxu0
        %v906 = vpop.f32.mrb[0].mxu0
        %907 = vdwg.mxu0
        %vm908 = vcmask 64512
        %v909 = vsel %vm908, %v903, -inf
        %910 = vmax.xlane.f32.xlu0 %v909
        %v911 = vpop.xlane.xlu0 %910
        %v912 = vsub.f32 %v903, %v911
        %v913 = vmul.f32 %v912, 1.442695
        %v914 = vpow.pop %v913
        %v915 = vsel %vm908, %v914, 0.0
        %916 = vadd.xlane.f32.xlu0 %v915
        %v917 = vpop.xlane.xlu0 %916
        %v918 = vrcp.pop %v917
        %v919 = vmul.f32 %v914, %v918
        %v920 = vpack.c.bf16 %v919, %v919
        %v922 = vsel %vm908, %v920, 0
        %vm924 = vcmask 1043456
        %v926 = vsel %vm924, %v867, 0
        %928 = vmatprep.subr.bf16.mxu0 0
        %929 = vmatpush1.bf16.msra.mxu0 %v926
        %930 = vmatprep.subr.bf16.mxu0 0
        %931 = vmatpush1.bf16.msra.mxu0 0
        %932 = vmatprep.subr.bf16.mxu0 0
        %933 = vmatpush1.bf16.msra.mxu0 0
        %934 = vmatprep.subr.bf16.mxu0 0
        %935 = vmatpush1.bf16.msra.mxu0 0
        %936 = vmatprep.subr.bf16.mxu0 0
        %937 = vmatpush1.bf16.msra.mxu0 0
        %938 = vmatprep.subr.bf16.mxu0 0
        %939 = vmatpush1.bf16.msra.mxu0 0
        %940 = vmatprep.subr.bf16.mxu0 0
        %941 = vmatpush1.bf16.msra.mxu0 0
        %942 = vmatprep.subr.bf16.mxu0 0
        %943 = vmatpush1.bf16.msra.mxu0 0
        %944 = vmatprep.subr.bf16.mxu0 0
        %945 = vmatpush1.bf16.msra.mxu0 0
        %946 = vmatprep.subr.bf16.mxu0 0
        %947 = vmatpush1.bf16.msra.mxu0 0
        %948 = vmatprep.subr.bf16.mxu0 0
        %949 = vmatpush1.bf16.msra.mxu0 0
        %950 = vmatprep.subr.bf16.mxu0 0
        %951 = vmatpush1.bf16.msra.mxu0 0
        %952 = vmatprep.subr.bf16.mxu0 0
        %953 = vmatpush1.bf16.msra.mxu0 0
        %954 = vmatprep.subr.bf16.mxu0 0
        %955 = vmatpush1.bf16.msra.mxu0 0
        %956 = vmatprep.subr.bf16.mxu0 0
        %957 = vmatpush1.bf16.msra.mxu0 0
        %958 = vmatprep.subr.bf16.mxu0 0
        %959 = vmatpush1.bf16.msra.mxu0 0
        %960 = vmatprep.mubr.bf16.mxu0 0
        %961 = vmatmul.mubr.bf16.gmra.mrb[0].mxu0 %v922
        %v962 = vpop.f32.mrb[0].mxu0
        %v963 = vadd.f32 0.0, %v962
        %v964 = vpop.f32.mrb[0].mxu0
        %v965 = vpop.f32.mrb[0].mxu0
        %v966 = vpop.f32.mrb[0].mxu0
        %967 = vdwg.mxu0
        %v968 = vpack.c.bf16 %v963, %v963
        %v969 = vld [vmem:[%s9] sm:$0xf]
        %v970 = vld [vmem:[%s9 + $0x4] sm:$0xf]
        %v971 = vld [vmem:[%s9 + $0x8] sm:$0xf]
        %v972 = vld [vmem:[%s9 + $0xc] sm:$0xf]
        %v973 = vld [vmem:[%s9 + $0x10] sm:$0xf]
        %v974 = vld [vmem:[%s9 + $0x14] sm:$0xf]
        %v975 = vld [vmem:[%s9 + $0x18] sm:$0xf]
        %v976 = vld [vmem:[%s9 + $0x1c] sm:$0xf]
        %v977 = vld [vmem:[%s9 + $0x20] sm:$0xf]
        %v978 = vld [vmem:[%s9 + $0x24] sm:$0xf]
        %v979 = vld [vmem:[%s9 + $0x28] sm:$0xf]
        %v980 = vld [vmem:[%s9 + $0x2c] sm:$0xf]
        %v981 = vld [vmem:[%s9 + $0x30] sm:$0xf]
        %v982 = vld [vmem:[%s9 + $0x34] sm:$0xf]
        %v983 = vld [vmem:[%s9 + $0x38] sm:$0xf]
        %v984 = vld [vmem:[%s9 + $0x3c] sm:$0xf]
        %v985 = vld [vmem:[%s10] sm:$0x1]
        %v987 = vlaneseq
        %v988 = vshrl.u32 %v987, 7
        %v989 = vsub.s32 0, %v988
        %v990 = vrot.slane %v985, %v989
        %v1008 = vunpack.c.l.b16 %v969
        %v1009 = vunpack.c.l.b16 %v970
        %v1010 = vunpack.c.l.b16 %v971
        %v1011 = vunpack.c.l.b16 %v972
        %v1012 = vunpack.c.l.b16 %v973
        %v1013 = vunpack.c.l.b16 %v974
        %v1014 = vunpack.c.l.b16 %v975
        %v1015 = vunpack.c.l.b16 %v976
        %v1016 = vunpack.c.l.b16 %v977
        %v1017 = vunpack.c.l.b16 %v978
        %v1018 = vunpack.c.l.b16 %v979
        %v1019 = vunpack.c.l.b16 %v980
        %v1020 = vunpack.c.l.b16 %v981
        %v1021 = vunpack.c.l.b16 %v982
        %v1022 = vunpack.c.l.b16 %v983
        %v1023 = vunpack.c.l.b16 %v984
        %v1024 = vpack.c.b16 %v1009, %v1008
        %v1025 = vpack.c.b16 %v1011, %v1010
        %v1026 = vpack.c.b16 %v1013, %v1012
        %v1027 = vpack.c.b16 %v1015, %v1014
        %v1028 = vpack.c.b16 %v1017, %v1016
        %v1029 = vpack.c.b16 %v1019, %v1018
        %v1030 = vpack.c.b16 %v1021, %v1020
        %v1031 = vpack.c.b16 %v1023, %v1022
        %1040 = vmatprep.subr.bf16.mxu0 0
        %1041 = vmatpush1.bf16.msra.mxu0 %v1024
        %1042 = vmatprep.subr.bf16.mxu0 0
        %1043 = vmatpush1.bf16.msra.mxu0 %v1025
        %1044 = vmatprep.subr.bf16.mxu0 0
        %1045 = vmatpush1.bf16.msra.mxu0 %v1026
        %1046 = vmatprep.subr.bf16.mxu0 0
        %1047 = vmatpush1.bf16.msra.mxu0 %v1027
        %1048 = vmatprep.subr.bf16.mxu0 0
        %1049 = vmatpush1.bf16.msra.mxu0 %v1028
        %1050 = vmatprep.subr.bf16.mxu0 0
        %1051 = vmatpush1.bf16.msra.mxu0 %v1029
        %1052 = vmatprep.subr.bf16.mxu0 0
        %1053 = vmatpush1.bf16.msra.mxu0 %v1030
        %1054 = vmatprep.subr.bf16.mxu0 0
        %1055 = vmatpush1.bf16.msra.mxu0 %v1031
        %1056 = vmatprep.subr.bf16.mxu0 0
        %1057 = vmatpush1.bf16.msra.mxu0 0
        %1058 = vmatprep.subr.bf16.mxu0 0
        %1059 = vmatpush1.bf16.msra.mxu0 0
        %1060 = vmatprep.subr.bf16.mxu0 0
        %1061 = vmatpush1.bf16.msra.mxu0 0
        %1062 = vmatprep.subr.bf16.mxu0 0
        %1063 = vmatpush1.bf16.msra.mxu0 0
        %1064 = vmatprep.subr.bf16.mxu0 0
        %1065 = vmatpush1.bf16.msra.mxu0 0
        %1066 = vmatprep.subr.bf16.mxu0 0
        %1067 = vmatpush1.bf16.msra.mxu0 0
        %1068 = vmatprep.subr.bf16.mxu0 0
        %1069 = vmatpush1.bf16.msra.mxu0 0
        %1070 = vmatprep.subr.bf16.mxu0 0
        %1071 = vmatpush1.bf16.msra.mxu0 0
        %1072 = vmatprep.mubr.bf16.mxu0 0
        %1073 = vmatmul.mubr.bf16.gmra.mrb[0].mxu0 %v968
        %v1074 = vpop.f32.mrb[0].mxu0
        %v1075 = vadd.f32 %v990, %v1074
        %v1076 = vpop.f32.mrb[0].mxu0
        %v1077 = vpop.f32.mrb[0].mxu0
        %v1078 = vpop.f32.mrb[0].mxu0
        %1079 = vdwg.mxu0
        %v1080 = vld [vmem:[%s516] sm:$0xff]
        %v1081 = vadd.f32 %v1080, %v1075
        %1082 = vadd.xlane.f32.xlu0 %v1081
        %v1083 = vpop.xlane.xlu0 %1082
        %v1084 = vmul.f32 %v1083, 0.03125
        %v1085 = vmul.f32 %v1081, %v1081
        %1086 = vadd.xlane.f32.xlu0 %v1085
        %v1087 = vpop.xlane.xlu0 %1086
        %v1088 = vmul.f32 %v1087, 0.03125
        %v1089 = vmul.f32 %v1084, %v1084
        %v1090 = vsub.f32 %v1088, %v1089
        %v1091 = vsub.f32 %v1081, %v1084
        %v1092 = vadd.f32 %v1090, 1e-05
        %v1093 = vrsqrt.pop %v1092
        %v1094 = vmul.f32 %v1091, %v1093
        %v1095 = vld [vmem:[%s11] sm:$0x1]
        %v1097 = vlaneseq
        %v1098 = vshrl.u32 %v1097, 7
        %v1099 = vsub.s32 0, %v1098
        %v1100 = vrot.slane %v1095, %v1099
        %v1102 = vmul.f32 %v1094, %v1100
        %v1103 = vld [vmem:[%s12] sm:$0x1]
        %v1105 = vlaneseq
        %v1106 = vshrl.u32 %v1105, 7
        %v1107 = vsub.s32 0, %v1106
        %v1108 = vrot.slane %v1103, %v1107
        %v1110 = vadd.f32 %v1102, %v1108
        %1111 = vst [vmem:[%s512] sm:$0xff] %v1110
        %s1112 = sand.u32 %s326, 1
        %s1113 = scalar_lea.sflag [#allocation4], %s1112
        %s1114 = sand.u32 %s326, 1
        %s1115 = smul.addr %s1114, 8
        %s1116 = scalar_lea.vmem [#allocation10], %s1115
        // Predicated region
        $region89: #{multi_head_attention.1} parent=71 // pred_check
          %p1117 = pneg %p336
        $region90: #{multi_head_attention.1} parent=71 // pred_check_branch
          %1119 = sbr.rel (%p1117) target = $region92
        $region91: #{multi_head_attention.1} parent=71 // pred_region
          %s1121 = ssub.s32 128, 128
          %1122 = vsyncadd %s1113, %s1121
          %s1123 = smul.addr %s30, 128
          %s1124 = scalar_lea.hbm %s13, %s1123
          %s1126 = sshll.u32 %s1116, 4
          %s1127 = int_to_ptr.vmem [resolvable:$true] %s1126
          %1129 = dma.vmem_to_hbm [thread:$0]  %s1127, 128, %s1124, %s1113
        $region92: #{multi_head_attention.1} parent=71 // pred_fallthru
          _
      $region72: #{multi_head_attention.1} parent=5 // pred_fallthru
        _
      %p1130 = scmp.le.s32.totalorder 2, %s25
      // Predicated region
      $region93: #{multi_head_attention.1} parent=5 // pred_check
        %p1131 = pneg %p1130
      $region94: #{multi_head_attention.1} parent=5 // pred_check_branch
        %1133 = sbr.rel (%p1131) target = $region96
      $region95: #{multi_head_attention.1} parent=5 // pred_region
        %s1134 = ssub.s32 %s25, 2
        // Predicated region
        $region97: #{multi_head_attention.1} parent=95 // pred_check
          %p1135 = pneg %p342
        $region98: #{multi_head_attention.1} parent=95 // pred_check_branch
          %1137 = sbr.rel (%p1135) target = $region100
        $region99: #{multi_head_attention.1} parent=95 // pred_region
          %s1138 = sand.u32 %s327, 1
          %s1139 = scalar_lea.sflag [#allocation4], %s1138
          %s1140 = sand.u32 %s327, 1
          %s1141 = smul.addr %s1140, 8
          %s1142 = scalar_lea.vmem [#allocation10], %s1141
          %1143 = dma.done %s1139, 128
        $region100: #{multi_head_attention.1} parent=95 // pred_fallthru
          _
      $region96: #{multi_head_attention.1} parent=5 // pred_fallthru
        _
    $region6: #{multi_head_attention.1} parent=1 // loop_footer
      %s29 = sadd.s32 1, %s25
    $region7: #{multi_head_attention.1} parent=1 // loop_footer_branch
      %24 = sbr.rel target = $region3
    $region8: #{multi_head_attention.1} parent=1 // loop_exit
      _
    %1144 = vsyncpa [#allocation3], 1
    %s1145 = scalar_lea.sflag [#allocation3], 1
    %1146 = vsyncpa %s1145, 1
    %1147 = vsyncpa [#allocation6], 1
    %1148 = vsyncpa [#allocation9], 1
    %1149 = vsyncpa [#allocation4], 1
    %s1150 = scalar_lea.sflag [#allocation4], 1
    %1151 = vsyncpa %s1150, 1

</llo_original>
